<compile_context>
chip_gen: v5e
topology: v5e:2x2
jax: 0.10.0
libtpu: 0.0.40
codegen_flags: <defaults>
</compile_context>

<pallas_src>
import math

import jax
import jax.numpy as jnp
from jax.experimental import pallas as pl
from jax.experimental.pallas import tpu as pltpu


# ----------------------------------------------------------------------------
# Kernels
# ----------------------------------------------------------------------------

def _fused_kernel_bias(x_ref, adj_ref, w_ref, b_ref, o_ref, acc_ref):
    """acc += adj_tile @ (x_kblock @ W); finalize with bias."""
    k = pl.program_id(1)

    @pl.when(k == 0)
    def _():
        acc_ref[...] = jnp.zeros_like(acc_ref)

    support = jnp.dot(x_ref[...], w_ref[...], preferred_element_type=jnp.float32)
    support = support.astype(adj_ref.dtype)
    acc_ref[...] += jnp.dot(adj_ref[...], support,
                            preferred_element_type=jnp.float32)

    @pl.when(k == pl.num_programs(1) - 1)
    def _():
        o_ref[...] = (acc_ref[...] + b_ref[...]).astype(o_ref.dtype)


def _fused_kernel_nobias(x_ref, adj_ref, w_ref, o_ref, acc_ref):
    k = pl.program_id(1)

    @pl.when(k == 0)
    def _():
        acc_ref[...] = jnp.zeros_like(acc_ref)

    support = jnp.dot(x_ref[...], w_ref[...], preferred_element_type=jnp.float32)
    support = support.astype(adj_ref.dtype)
    acc_ref[...] += jnp.dot(adj_ref[...], support,
                            preferred_element_type=jnp.float32)

    @pl.when(k == pl.num_programs(1) - 1)
    def _():
        o_ref[...] = acc_ref[...].astype(o_ref.dtype)


def _sup_kernel_bias(s_ref, adj_ref, b_ref, o_ref, acc_ref):
    """acc += adj_tile @ support_kblock (support precomputed); finalize + bias."""
    k = pl.program_id(1)

    @pl.when(k == 0)
    def _():
        acc_ref[...] = jnp.zeros_like(acc_ref)

    acc_ref[...] += jnp.dot(adj_ref[...], s_ref[...],
                            preferred_element_type=jnp.float32)

    @pl.when(k == pl.num_programs(1) - 1)
    def _():
        o_ref[...] = (acc_ref[...] + b_ref[...]).astype(o_ref.dtype)


def _sup_kernel_nobias(s_ref, adj_ref, o_ref, acc_ref):
    k = pl.program_id(1)

    @pl.when(k == 0)
    def _():
        acc_ref[...] = jnp.zeros_like(acc_ref)

    acc_ref[...] += jnp.dot(adj_ref[...], s_ref[...],
                            preferred_element_type=jnp.float32)

    @pl.when(k == pl.num_programs(1) - 1)
    def _():
        o_ref[...] = acc_ref[...].astype(o_ref.dtype)


def _support_kernel(x_ref, w_ref, o_ref):
    """One row-tile of support = X @ W (used by the precompute path)."""
    o_ref[...] = jnp.dot(x_ref[...], w_ref[...],
                         preferred_element_type=jnp.float32).astype(o_ref.dtype)


# ----------------------------------------------------------------------------
# Wrapper
# ----------------------------------------------------------------------------

def _round_up(v, m):
    return ((v + m - 1) // m) * m


def _vmem_budget_bytes():
    """Per-chip usable VMEM cap (bytes) for vmem_limit_bytes."""
    try:
        cap = int(pltpu.get_tpu_info().vmem_capacity_bytes)
    except Exception:
        cap = 64 << 20  # conservative (v7x-sized) fallback, safe everywhere
    if cap <= (64 << 20):
        # v7x: 64 MiB / TensorCore -- leave headroom for Mosaic scratch.
        usable = min(cap - (12 << 20), 52 << 20)
    else:
        # v5e / v6e: 128 MiB -- raise the cap so tiles can grow.
        usable = min(cap - (24 << 20), 100 << 20)
    return max(usable, 16 << 20)


def _pad2(a, rows, cols, dtype):
    """Zero-pad a 2-D array to (rows, cols) in `dtype`; no-op when already there."""
    if a.shape == (rows, cols) and a.dtype == dtype:
        return a
    return jnp.pad(a.astype(dtype),
                   ((0, rows - a.shape[0]), (0, cols - a.shape[1])))


def _precompute_support(x_p, w_p, ts, in_f_pad, out_f_pad, vmem_limit, cdt):
    """support = X @ W, padded; small row-tiled Pallas matmul."""
    n_rows = x_p.shape[0]
    eb = jnp.dtype(cdt).itemsize
    need = 2 * eb * (ts * in_f_pad + in_f_pad * out_f_pad + ts * out_f_pad)
    if need > vmem_limit - (6 << 20):
        # TODO(synk): K-tile this precompute for very large in_features.
        return jnp.dot(x_p, w_p, preferred_element_type=jnp.float32).astype(cdt)
    return pl.pallas_call(
        _support_kernel,
        out_shape=jax.ShapeDtypeStruct((n_rows, out_f_pad), cdt),
        grid=(n_rows // ts,),
        in_specs=[pl.BlockSpec((ts, in_f_pad), lambda i: (i, 0)),
                  pl.BlockSpec((in_f_pad, out_f_pad), lambda i: (0, 0))],
        out_specs=pl.BlockSpec((ts, out_f_pad), lambda i: (i, 0)),
        compiler_params=pltpu.CompilerParams(
            dimension_semantics=("parallel",),
            vmem_limit_bytes=vmem_limit),
    )(x_p, w_p)


def graph_convolution(x, adj, weight, bias=None, *, tm=1024, tk=2048,
                      compute_dtype=None):
    """GCN layer forward: adj @ (x @ weight) (+ bias).

    x: [N, in_f], adj: [N, N] (dense view of the sparse adjacency),
    weight: [in_f, out_f], bias: [out_f] or None.
    compute_dtype: optional MXU operand dtype (e.g. jnp.bfloat16); accumulation
    and the bias add stay in f32.
    """
    n, in_f = x.shape
    out_f = weight.shape[1]
    out_dtype = x.dtype
    cdt = jnp.dtype(compute_dtype) if compute_dtype is not None else jnp.dtype(x.dtype)
    eb = cdt.itemsize
    out_eb = jnp.dtype(out_dtype).itemsize

    n128 = _round_up(n, 128)
    in_f_pad = _round_up(in_f, 128)     # lane-dense x k-block for the fused path
    out_f_pad = _round_up(out_f, 128)

    vmem_limit = _vmem_budget_bytes()

    # Support placement: precompute X @ W once when its streamed width
    # (out_f_pad) is narrower than recomputing from X (in_f_pad); otherwise
    # recompute per (i, k) inside the kernel (cheaper in HBM traffic).
    precompute = in_f_pad > out_f_pad
    stream_cols = out_f_pad if precompute else in_f_pad
    w_resident = 0 if precompute else 2 * eb * in_f_pad * out_f_pad

    # --- tile sizes: MXU/lane-friendly multiples of 128, clamped to the graph
    tm_ = max(128, min(_round_up(tm, 128), n128))
    tk_ = max(128, min(_round_up(tk, 128), n128))
    # keep >= 2 output-row tiles so the "parallel" axis feeds both TCs (v7x)
    if n128 >= 256:
        tm_ = min(tm_, _round_up(-(-n // 2), 128))

    def _est(tm_c, tk_c):
        return (2 * eb * tm_c * tk_c                 # adj tile, double-buffered
                + 2 * eb * tk_c * stream_cols        # x or support stream
                + w_resident                          # resident W (fused path)
                + 2 * 4 * out_f_pad                  # bias (f32)
                + 2 * out_eb * tm_c * out_f_pad      # output tile, double-buffered
                + 4 * tm_c * out_f_pad)              # f32 accumulator scratch

    budget = vmem_limit - (6 << 20)
    while _est(tm_, tk_) > budget and (tm_ > 128 or tk_ > 128):
        if tk_ >= tm_ and tk_ > 128:
            tk_ = max(128, (tk_ // 2) // 128 * 128)
        else:
            tm_ = max(128, (tm_ // 2) // 128 * 128)

    # --- independent row / column padding (no lcm blow-up, no full rewrite
    #     of adj when it is already aligned and in the compute dtype)
    n_rows_pad = _round_up(n, tm_)
    n_cols_pad = _round_up(n, tk_)

    adj_p = _pad2(adj, n_rows_pad, n_cols_pad, cdt)
    w_p = _pad2(weight, in_f_pad, out_f_pad, cdt)
    x_p = _pad2(x, n_cols_pad, in_f_pad, cdt)

    if precompute:
        support_p = _precompute_support(x_p, w_p, tk_, in_f_pad, out_f_pad,
                                        vmem_limit, cdt)
        in_specs = [
            pl.BlockSpec((tk_, out_f_pad), lambda i, k: (k, 0)),   # support k-block
            pl.BlockSpec((tm_, tk_), lambda i, k: (i, k)),         # adj (i,k) tile
        ]
        operands = [support_p, adj_p]
        kernel = _sup_kernel_bias if bias is not None else _sup_kernel_nobias
    else:
        in_specs = [
            pl.BlockSpec((tk_, in_f_pad), lambda i, k: (k, 0)),    # x k-block
            pl.BlockSpec((tm_, tk_), lambda i, k: (i, k)),         # adj (i,k) tile
            pl.BlockSpec((in_f_pad, out_f_pad), lambda i, k: (0, 0)),  # full W
        ]
        operands = [x_p, adj_p, w_p]
        kernel = _fused_kernel_bias if bias is not None else _fused_kernel_nobias

    if bias is not None:
        b_p = jnp.zeros((1, out_f_pad), jnp.float32).at[0, :out_f].set(
            bias.astype(jnp.float32))
        in_specs.append(pl.BlockSpec((1, out_f_pad), lambda i, k: (0, 0)))
        operands.append(b_p)

    grid = (n_rows_pad // tm_, n_cols_pad // tk_)

    out_p = pl.pallas_call(
        kernel,
        out_shape=jax.ShapeDtypeStruct((n_rows_pad, out_f_pad), out_dtype),
        grid_spec=pltpu.PrefetchScalarGridSpec(
            num_scalar_prefetch=0,
            grid=grid,
            in_specs=in_specs,
            out_specs=pl.BlockSpec((tm_, out_f_pad), lambda i, k: (i, 0)),
            scratch_shapes=[pltpu.VMEM((tm_, out_f_pad), jnp.float32)],
        ),
        compiler_params=pltpu.CompilerParams(
            dimension_semantics=("parallel", "arbitrary"),
            vmem_limit_bytes=vmem_limit,
        ),
    )(*operands)

    return out_p[:n, :out_f]


# ----------------------------------------------------------------------------
# Self-test
# ----------------------------------------------------------------------------

if __name__ == "__main__":
    key = jax.random.PRNGKey(0)
    k_x, k_adj, k_w, k_b, k_x2, k_adj2, k_x3, k_adj3, k_w3 = jax.random.split(key, 9)

    # ---- small GCN consistent with the module: 16 nodes, 32 -> 64 features
    N, IN_F, OUT_F = 16, 32, 64
    x = jax.random.normal(k_x, (N, IN_F), dtype=jnp.float32)
    adj_raw = jax.random.uniform(k_adj, (N, N), dtype=jnp.float32)
    adj = (adj_raw + adj_raw.T) / 2.0
    adj = adj / jnp.sum(adj, axis=1, keepdims=True)

    # reset_parameters(): uniform(-stdv, stdv), stdv = 1/sqrt(out_features)
    stdv = 1.0 / math.sqrt(OUT_F)
    weight = jax.random.uniform(k_w, (IN_F, OUT_F), minval=-stdv, maxval=stdv,
                                dtype=jnp.float32)
    bias = jax.random.uniform(k_b, (OUT_F,), minval=-stdv, maxval=stdv,
                              dtype=jnp.float32)

    ref = adj @ (x @ weight) + bias[None, :]
    out = jax.block_until_ready(graph_convolution(x, adj, weight, bias))
    assert out.shape == (N, OUT_F)
    assert jnp.allclose(out, ref, atol=1e-4, rtol=1e-4)

    # bias=None path (separate kernel variant, no zero add)
    out_nb = jax.block_until_ready(graph_convolution(x, adj, weight, None))
    assert jnp.allclose(out_nb, adj @ (x @ weight), atol=1e-4, rtol=1e-4)

    # ---- multi-tile path: exercises k-accumulation + parallel row tiling
    #      (N is 128-aligned, so the adj pad/cast is skipped entirely)
    N2 = 384
    x2 = jax.random.normal(k_x2, (N2, IN_F), dtype=jnp.float32)
    adj2_raw = jax.random.uniform(k_adj2, (N2, N2), dtype=jnp.float32)
    adj2 = (adj2_raw + adj2_raw.T) / 2.0
    adj2 = adj2 / jnp.sum(adj2, axis=1, keepdims=True)
    ref2 = adj2 @ (x2 @ weight) + bias[None, :]
    out2 = jax.block_until_ready(
        graph_convolution(x2, adj2, weight, bias, tm=128, tk=128))
    assert out2.shape == (N2, OUT_F)
    assert jnp.allclose(out2, ref2, atol=1e-4, rtol=1e-4)

    # ---- precomputed-support path: in_features > padded out_features
    N3, IN_F3, OUT_F3 = 256, 256, 64
    x3 = jax.random.normal(k_x3, (N3, IN_F3), dtype=jnp.float32)
    adj3_raw = jax.random.uniform(k_adj3, (N3, N3), dtype=jnp.float32)
    adj3 = (adj3_raw + adj3_raw.T) / 2.0
    adj3 = adj3 / jnp.sum(adj3, axis=1, keepdims=True)
    stdv3 = 1.0 / math.sqrt(OUT_F3)
    weight3 = jax.random.uniform(k_w3, (IN_F3, OUT_F3), minval=-stdv3,
                                 maxval=stdv3, dtype=jnp.float32)
    ref3 = adj3 @ (x3 @ weight3) + bias[None, :OUT_F3]
    out3 = jax.block_until_ready(
        graph_convolution(x3, adj3, weight3, bias[:OUT_F3]))
    assert out3.shape == (N3, OUT_F3)
    assert jnp.allclose(out3, ref3, atol=1e-4, rtol=1e-4)

    # ---- bf16 operands (f32 accumulation): halves adj HBM traffic
    out_bf16 = jax.block_until_ready(
        graph_convolution(x2, adj2, weight, bias, tm=128, tk=128,
                          compute_dtype=jnp.bfloat16))
    assert jnp.allclose(out_bf16, ref2, atol=5e-2, rtol=5e-2)

    print("KERNEL_OK")
</pallas_src>

<mosaic_0001>
module attributes {stable_mosaic.version = 11 : i64} {
  func.func @_fused_kernel_bias(%arg0: i32, %arg1: i32, %arg2: memref<128x128xf32, #tpu.memory_space<vmem>>, %arg3: memref<128x128xf32, #tpu.memory_space<vmem>>, %arg4: memref<128x128xf32, #tpu.memory_space<vmem>>, %arg5: memref<1x128xf32, #tpu.memory_space<vmem>>, %arg6: memref<128x128xf32, #tpu.memory_space<vmem>>, %arg7: memref<128x128xf32, #tpu.memory_space<vmem>>) attributes {dimension_semantics = [#tpu.dimension_semantics<parallel>, #tpu.dimension_semantics<arbitrary>], iteration_bounds = array<i64: 1, 1>, scalar_prefetch = 0 : i64, scratch_operands = 1 : i64, tpu.core_type = #tpu.core_type<tc>, window_params = [{transform_indices = @transform_0, window_bounds = array<i64: 128, 128>}, {transform_indices = @transform_1, window_bounds = array<i64: 128, 128>}, {pipeline_mode = #tpu.pipeline_mode<synchronous>, transform_indices = @transform_2, window_bounds = array<i64: 128, 128>}, {pipeline_mode = #tpu.pipeline_mode<synchronous>, transform_indices = @transform_3, window_bounds = array<i64: 1, 128>}, {transform_indices = @transform_4, window_bounds = array<i64: 128, 128>}]} {
    %c0_i32 = arith.constant 0 : i32
    %0 = arith.cmpi eq, %arg1, %c0_i32 : i32
    %1 = arith.extui %0 : i1 to i32
    %c0_i32_0 = arith.constant 0 : i32
    %2 = arith.cmpi ne, %1, %c0_i32_0 : i32
    scf.if %2 {
      %cst_13 = arith.constant 0.000000e+00 : f32
      %14 = vector.broadcast %cst_13 : f32 to vector<128x128xf32>
      %c0_14 = arith.constant 0 : index
      %c0_15 = arith.constant 0 : index
      %15 = vector.load %arg7[%c0_14, %c0_15] : memref<128x128xf32, #tpu.memory_space<vmem>>, vector<128x128xf32>
      tpu.vector_store %arg7[%c0_14, %c0_15], %14 {strides = array<i32>} : memref<128x128xf32, #tpu.memory_space<vmem>>, vector<128x128xf32>,
    } else {
    }
    %c0 = arith.constant 0 : index
    %c0_1 = arith.constant 0 : index
    %3 = vector.load %arg2[%c0, %c0_1] : memref<128x128xf32, #tpu.memory_space<vmem>>, vector<128x128xf32>
    %c0_2 = arith.constant 0 : index
    %c0_3 = arith.constant 0 : index
    %4 = vector.load %arg4[%c0_2, %c0_3] : memref<128x128xf32, #tpu.memory_space<vmem>>, vector<128x128xf32>
    %cst = arith.constant dense<0.000000e+00> : vector<128x128xf32>
    %5 = tpu.matmul %3, %4, %cst {dimension_numbers = #tpu.dot_dimension_numbers<[1], [0], [0], [1], [0, 0, 1, 1], [], []>} : vector<128x128xf32>, vector<128x128xf32>, vector<128x128xf32> -> vector<128x128xf32>
    %c0_4 = arith.constant 0 : index
    %c0_5 = arith.constant 0 : index
    %6 = vector.load %arg7[%c0_4, %c0_5] : memref<128x128xf32, #tpu.memory_space<vmem>>, vector<128x128xf32>
    %c0_6 = arith.constant 0 : index
    %c0_7 = arith.constant 0 : index
    %7 = vector.load %arg3[%c0_6, %c0_7] : memref<128x128xf32, #tpu.memory_space<vmem>>, vector<128x128xf32>
    %cst_8 = arith.constant dense<0.000000e+00> : vector<128x128xf32>
    %8 = tpu.matmul %7, %5, %cst_8 {dimension_numbers = #tpu.dot_dimension_numbers<[1], [0], [0], [1], [0, 0, 1, 1], [], []>} : vector<128x128xf32>, vector<128x128xf32>, vector<128x128xf32> -> vector<128x128xf32>
    %9 = arith.addf %6, %8 : vector<128x128xf32>
    %c0_9 = arith.constant 0 : index
    %c0_10 = arith.constant 0 : index
    %10 = vector.load %arg7[%c0_9, %c0_10] : memref<128x128xf32, #tpu.memory_space<vmem>>, vector<128x128xf32>
    tpu.vector_store %arg7[%c0_9, %c0_10], %9 {strides = array<i32>} : memref<128x128xf32, #tpu.memory_space<vmem>>, vector<128x128xf32>,
    %c0_i32_11 = arith.constant 0 : i32
    %11 = arith.cmpi eq, %arg1, %c0_i32_11 : i32
    %12 = arith.extui %11 : i1 to i32
    %c0_i32_12 = arith.constant 0 : i32
    %13 = arith.cmpi ne, %12, %c0_i32_12 : i32
    scf.if %13 {
      %c0_13 = arith.constant 0 : index
      %c0_14 = arith.constant 0 : index
      %14 = vector.load %arg7[%c0_13, %c0_14] : memref<128x128xf32, #tpu.memory_space<vmem>>, vector<128x128xf32>
      %c0_15 = arith.constant 0 : index
      %c0_16 = arith.constant 0 : index
      %15 = vector.load %arg5[%c0_15, %c0_16] : memref<1x128xf32, #tpu.memory_space<vmem>>, vector<1x128xf32>
      %16 = vector.broadcast %15 : vector<1x128xf32> to vector<128x128xf32>
      %17 = arith.addf %14, %16 : vector<128x128xf32>
      %c0_17 = arith.constant 0 : index
      %c0_18 = arith.constant 0 : index
      %18 = vector.load %arg6[%c0_17, %c0_18] : memref<128x128xf32, #tpu.memory_space<vmem>>, vector<128x128xf32>
      tpu.vector_store %arg6[%c0_17, %c0_18], %17 {strides = array<i32>} : memref<128x128xf32, #tpu.memory_space<vmem>>, vector<128x128xf32>,
    } else {
    }
    return
  }
  func.func @transform_0(%arg0: i32, %arg1: i32) -> (i32, i32) {
    %c0_i32 = arith.constant 0 : i32
    %c0_i32_0 = arith.constant 0 : i32
    return %arg1, %c0_i32 : i32, i32
  }
  func.func @transform_1(%arg0: i32, %arg1: i32) -> (i32, i32) {
    %c0_i32 = arith.constant 0 : i32
    return %arg0, %arg1 : i32, i32
  }
  func.func @transform_2(%arg0: i32, %arg1: i32) -> (i32, i32) {
    %c0_i32 = arith.constant 0 : i32
    %c0_i32_0 = arith.constant 0 : i32
    %c0_i32_1 = arith.constant 0 : i32
    return %c0_i32, %c0_i32_0 : i32, i32
  }
  func.func @transform_3(%arg0: i32, %arg1: i32) -> (i32, i32) {
    %c0_i32 = arith.constant 0 : i32
    %c0_i32_0 = arith.constant 0 : i32
    %c0_i32_1 = arith.constant 0 : i32
    return %c0_i32, %c0_i32_0 : i32, i32
  }
  func.func @transform_4(%arg0: i32, %arg1: i32) -> (i32, i32) {
    %c0_i32 = arith.constant 0 : i32
    %c0_i32_0 = arith.constant 0 : i32
    return %arg0, %c0_i32 : i32, i32
  }
}

</mosaic_0001>

<llo_original>
// kernel: tpu_custom_call.1
$region0: #{tpu_custom_call.1}
  #allocation0 [shape = 'u32[]', space=smem, size = 0x4, offset = 0x4, fixed_abs, tag = 'smem constant byte address 0x4 - core index']
  #allocation1 [shape = 'u32[72,128]{1,0:T(1,128)}', space=vmem, size = 0x9000, scoped, tag = 'internal scratch']
  #allocation2 [shape = 'f32[128,128]{1,0:T(8,128)}', space=vmem, size = 0x10000, scoped, tag = 'scratch operand']
  %s0 = inlined_call_operand.hbm [shape: f32[128,128], index: 0, kind: input, shape index: {}]
  %s1 = inlined_call_operand.hbm [shape: f32[128,128], index: 1, kind: input, shape index: {}]
  %s2 = inlined_call_operand.hbm [shape: f32[128,128], index: 2, kind: input, shape index: {}]
  %s3 = inlined_call_operand.vmem [shape: f32[1,128], index: 3, kind: input, shape index: {}]
  %s4 = inlined_call_operand.hbm [shape: f32[128,128], index: 4, kind: output, shape index: {}]
  %s5 = sld [smem:[#allocation0]]
  $region46: #{tpu_custom_call.1} parent=0
    _
  %s7 = ssub.s32 1, %s5
  %s8 = scalar_select 0, %s7, %s5
  $region1: #{tpu_custom_call.1} parent=0
    #allocation3 [shape = 'u8[65536]{0}', space=vmem, size = 0x10000, scoped, tag = 'input window, operand 0, single buffered']
    #allocation4 [shape = 's32[1]{0}', space=sflag, size = 0x4, scoped, tag = 'scoped memory for tpu_custom_call.1']
    #allocation5 [shape = 's32[1]{0}', space=sflag, size = 0x4, scoped, tag = 'scoped memory for tpu_custom_call.1']
    #allocation6 [shape = 'u8[65536]{0}', space=vmem, size = 0x10000, scoped, tag = 'input window, operand 1, single buffered']
    #allocation7 [shape = 's32[1]{0}', space=sflag, size = 0x4, scoped, tag = 'scoped memory for tpu_custom_call.1']
    #allocation8 [shape = 'u8[65536]{0}', space=vmem, size = 0x10000, scoped, tag = 'input window, operand 2, single buffered']
    #allocation9 [shape = 'u8[65536]{0}', space=vmem, size = 0x10000, scoped, tag = 'output window, operand 0, single buffered']
    %9 = vsyncpa [#allocation4], 0
    %10 = vsyncpa [#allocation7], 0
    %11 = vsyncpa [#allocation5], 0
    // Predicated region
    $region2: #{tpu_custom_call.1} parent=1 // pred_check
      _
    $region3: #{tpu_custom_call.1} parent=1 // pred_check_branch
      %13 = sbr.rel (0) target = $region5
    $region4: #{tpu_custom_call.1} parent=1 // pred_region
      %15 = vsyncadd [#allocation4], 0
      %s16 = sshll.u32 %s0, 4
      %s17 = int_to_ptr.hbm [resolvable:$true] %s16
      %s18 = sshll.u32 [#allocation3], 4
      %s19 = int_to_ptr.vmem [resolvable:$true] %s18
      %24 = dma.hbm_to_vmem [thread:$0]  %s17, 2048, %s19, [#allocation4], 128, 128, 8
    $region5: #{tpu_custom_call.1} parent=1 // pred_fallthru
      _
    // Predicated region
    $region6: #{tpu_custom_call.1} parent=1 // pred_check
      _
    $region7: #{tpu_custom_call.1} parent=1 // pred_check_branch
      %26 = sbr.rel (0) target = $region9
    $region8: #{tpu_custom_call.1} parent=1 // pred_region
      %28 = vsyncadd [#allocation7], 0
      %s29 = sshll.u32 %s1, 4
      %s30 = int_to_ptr.hbm [resolvable:$true] %s29
      %s31 = sshll.u32 [#allocation6], 4
      %s32 = int_to_ptr.vmem [resolvable:$true] %s31
      %37 = dma.hbm_to_vmem [thread:$0]  %s30, 2048, %s32, [#allocation7], 128, 128, 8
    $region9: #{tpu_custom_call.1} parent=1 // pred_fallthru
      _
    // Predicated region
    $region10: #{tpu_custom_call.1} parent=1 // pred_check
      _
    $region11: #{tpu_custom_call.1} parent=1 // pred_check_branch
      %39 = sbr.rel (0) target = $region13
    $region12: #{tpu_custom_call.1} parent=1 // pred_region
      %41 = vsyncadd [#allocation7], 0
      %s42 = sshll.u32 %s2, 4
      %s43 = int_to_ptr.hbm [resolvable:$true] %s42
      %s44 = sshll.u32 [#allocation8], 4
      %s45 = int_to_ptr.vmem [resolvable:$true] %s44
      %50 = dma.hbm_to_vmem [thread:$0]  %s43, 2048, %s45, [#allocation7], 128, 128, 8
    $region13: #{tpu_custom_call.1} parent=1 // pred_fallthru
      _
    // Predicated region
    $region14: #{tpu_custom_call.1} parent=1 // pred_check
      _
    $region15: #{tpu_custom_call.1} parent=1 // pred_check_branch
      %52 = sbr.rel (0) target = $region17
    $region16: #{tpu_custom_call.1} parent=1 // pred_region
      _
    $region17: #{tpu_custom_call.1} parent=1 // pred_fallthru
      _
    // Predicated region
    $region18: #{tpu_custom_call.1} parent=1 // pred_check
      _
    $region19: #{tpu_custom_call.1} parent=1 // pred_check_branch
      %54 = sbr.rel (0) target = $region21
    $region20: #{tpu_custom_call.1} parent=1 // pred_region
      %56 = dma.done [#allocation4], 2048
    $region21: #{tpu_custom_call.1} parent=1 // pred_fallthru
      _
    // Predicated region
    $region22: #{tpu_custom_call.1} parent=1 // pred_check
      _
    $region23: #{tpu_custom_call.1} parent=1 // pred_check_branch
      %58 = sbr.rel (0) target = $region25
    $region24: #{tpu_custom_call.1} parent=1 // pred_region
      %60 = dma.done [#allocation7], 2048
    $region25: #{tpu_custom_call.1} parent=1 // pred_fallthru
      _
    // Predicated region
    $region26: #{tpu_custom_call.1} parent=1 // pred_check
      _
    $region27: #{tpu_custom_call.1} parent=1 // pred_check_branch
      %62 = sbr.rel (0) target = $region29
    $region28: #{tpu_custom_call.1} parent=1 // pred_region
      %64 = dma.done [#allocation7], 2048
    $region29: #{tpu_custom_call.1} parent=1 // pred_fallthru
      _
    %p65 = scmp.eq.s32.totalorder 0, 0
    // Predicated region
    $region30: #{tpu_custom_call.1} parent=1 // pred_check
      %p66 = pneg %p65
    $region31: #{tpu_custom_call.1} parent=1 // pred_check_branch
      %68 = sbr.rel (%p66) target = $region33
    $region32: #{tpu_custom_call.1} parent=1 // pred_region
      %69 = vst [vmem:[#allocation2] sm:$0xff] 0.0
      %70 = vst [vmem:[#allocation2 + $0x8] sm:$0xff] 0.0
      %71 = vst [vmem:[#allocation2 + $0x10] sm:$0xff] 0.0
      %72 = vst [vmem:[#allocation2 + $0x18] sm:$0xff] 0.0
      %73 = vst [vmem:[#allocation2 + $0x20] sm:$0xff] 0.0
      %74 = vst [vmem:[#allocation2 + $0x28] sm:$0xff] 0.0
      %75 = vst [vmem:[#allocation2 + $0x30] sm:$0xff] 0.0
      %76 = vst [vmem:[#allocation2 + $0x38] sm:$0xff] 0.0
      %77 = vst [vmem:[#allocation2 + $0x40] sm:$0xff] 0.0
      %78 = vst [vmem:[#allocation2 + $0x48] sm:$0xff] 0.0
      %79 = vst [vmem:[#allocation2 + $0x50] sm:$0xff] 0.0
      %80 = vst [vmem:[#allocation2 + $0x58] sm:$0xff] 0.0
      %81 = vst [vmem:[#allocation2 + $0x60] sm:$0xff] 0.0
      %82 = vst [vmem:[#allocation2 + $0x68] sm:$0xff] 0.0
      %83 = vst [vmem:[#allocation2 + $0x70] sm:$0xff] 0.0
      %84 = vst [vmem:[#allocation2 + $0x78] sm:$0xff] 0.0
    $region33: #{tpu_custom_call.1} parent=1 // pred_fallthru
      _
    %v85 = vld [vmem:[#allocation3] sm:$0xff]
    %v86 = vld [vmem:[#allocation3 + $0x8] sm:$0xff]
    %v87 = vld [vmem:[#allocation3 + $0x10] sm:$0xff]
    %v88 = vld [vmem:[#allocation3 + $0x18] sm:$0xff]
    %v89 = vld [vmem:[#allocation3 + $0x20] sm:$0xff]
    %v90 = vld [vmem:[#allocation3 + $0x28] sm:$0xff]
    %v91 = vld [vmem:[#allocation3 + $0x30] sm:$0xff]
    %v92 = vld [vmem:[#allocation3 + $0x38] sm:$0xff]
    %v93 = vld [vmem:[#allocation3 + $0x40] sm:$0xff]
    %v94 = vld [vmem:[#allocation3 + $0x48] sm:$0xff]
    %v95 = vld [vmem:[#allocation3 + $0x50] sm:$0xff]
    %v96 = vld [vmem:[#allocation3 + $0x58] sm:$0xff]
    %v97 = vld [vmem:[#allocation3 + $0x60] sm:$0xff]
    %v98 = vld [vmem:[#allocation3 + $0x68] sm:$0xff]
    %v99 = vld [vmem:[#allocation3 + $0x70] sm:$0xff]
    %v100 = vld [vmem:[#allocation3 + $0x78] sm:$0xff]
    %v101 = vld [vmem:[#allocation8] sm:$0xff]
    %v102 = vld [vmem:[#allocation8 + $0x8] sm:$0xff]
    %v103 = vld [vmem:[#allocation8 + $0x10] sm:$0xff]
    %v104 = vld [vmem:[#allocation8 + $0x18] sm:$0xff]
    %v105 = vld [vmem:[#allocation8 + $0x20] sm:$0xff]
    %v106 = vld [vmem:[#allocation8 + $0x28] sm:$0xff]
    %v107 = vld [vmem:[#allocation8 + $0x30] sm:$0xff]
    %v108 = vld [vmem:[#allocation8 + $0x38] sm:$0xff]
    %v109 = vld [vmem:[#allocation8 + $0x40] sm:$0xff]
    %v110 = vld [vmem:[#allocation8 + $0x48] sm:$0xff]
    %v111 = vld [vmem:[#allocation8 + $0x50] sm:$0xff]
    %v112 = vld [vmem:[#allocation8 + $0x58] sm:$0xff]
    %v113 = vld [vmem:[#allocation8 + $0x60] sm:$0xff]
    %v114 = vld [vmem:[#allocation8 + $0x68] sm:$0xff]
    %v115 = vld [vmem:[#allocation8 + $0x70] sm:$0xff]
    %v116 = vld [vmem:[#allocation8 + $0x78] sm:$0xff]
    %117 = vmatpush.msra.mxu0 %v116
    %118 = vmatpush.msra.mxu0 %v115
    %119 = vmatpush.msra.mxu0 %v114
    %120 = vmatpush.msra.mxu0 %v113
    %121 = vmatpush.msra.mxu0 %v112
    %122 = vmatpush.msra.mxu0 %v111
    %123 = vmatpush.msra.mxu0 %v110
    %124 = vmatpush.msra.mxu0 %v109
    %125 = vmatpush.msra.mxu0 %v108
    %126 = vmatpush.msra.mxu0 %v107
    %127 = vmatpush.msra.mxu0 %v106
    %128 = vmatpush.msra.mxu0 %v105
    %129 = vmatpush.msra.mxu0 %v104
    %130 = vmatpush.msra.mxu0 %v103
    %131 = vmatpush.msra.mxu0 %v102
    %132 = vmatpush.msra.mxu0 %v101
    %133 = vmatmul.f32.gmra.mxu0 %v85
    %v134 = vpop.f32.mrf.mxu0
    %v135 = vadd.f32 0.0, %v134
    %136 = vmatmul.f32.gmra.mxu0 %v86
    %v137 = vpop.f32.mrf.mxu0
    %v138 = vadd.f32 0.0, %v137
    %139 = vmatmul.f32.gmra.mxu0 %v87
    %v140 = vpop.f32.mrf.mxu0
    %v141 = vadd.f32 0.0, %v140
    %142 = vmatmul.f32.gmra.mxu0 %v88
    %v143 = vpop.f32.mrf.mxu0
    %v144 = vadd.f32 0.0, %v143
    %145 = vmatmul.f32.gmra.mxu0 %v89
    %v146 = vpop.f32.mrf.mxu0
    %v147 = vadd.f32 0.0, %v146
    %148 = vmatmul.f32.gmra.mxu0 %v90
    %v149 = vpop.f32.mrf.mxu0
    %v150 = vadd.f32 0.0, %v149
    %151 = vmatmul.f32.gmra.mxu0 %v91
    %v152 = vpop.f32.mrf.mxu0
    %v153 = vadd.f32 0.0, %v152
    %154 = vmatmul.f32.gmra.mxu0 %v92
    %v155 = vpop.f32.mrf.mxu0
    %v156 = vadd.f32 0.0, %v155
    %157 = vmatmul.f32.gmra.mxu0 %v93
    %v158 = vpop.f32.mrf.mxu0
    %v159 = vadd.f32 0.0, %v158
    %160 = vmatmul.f32.gmra.mxu0 %v94
    %v161 = vpop.f32.mrf.mxu0
    %v162 = vadd.f32 0.0, %v161
    %163 = vmatmul.f32.gmra.mxu0 %v95
    %v164 = vpop.f32.mrf.mxu0
    %v165 = vadd.f32 0.0, %v164
    %166 = vmatmul.f32.gmra.mxu0 %v96
    %v167 = vpop.f32.mrf.mxu0
    %v168 = vadd.f32 0.0, %v167
    %169 = vmatmul.f32.gmra.mxu0 %v97
    %v170 = vpop.f32.mrf.mxu0
    %v171 = vadd.f32 0.0, %v170
    %172 = vmatmul.f32.gmra.mxu0 %v98
    %v173 = vpop.f32.mrf.mxu0
    %v174 = vadd.f32 0.0, %v173
    %175 = vmatmul.f32.gmra.mxu0 %v99
    %v176 = vpop.f32.mrf.mxu0
    %v177 = vadd.f32 0.0, %v176
    %178 = vmatmul.f32.gmra.mxu0 %v100
    %v179 = vpop.f32.mrf.mxu0
    %v180 = vadd.f32 0.0, %v179
    %181 = vdwg.mxu0
    %v182 = vld [vmem:[#allocation2] sm:$0xff]
    %v183 = vld [vmem:[#allocation2 + $0x8] sm:$0xff]
    %v184 = vld [vmem:[#allocation2 + $0x10] sm:$0xff]
    %v185 = vld [vmem:[#allocation2 + $0x18] sm:$0xff]
    %v186 = vld [vmem:[#allocation2 + $0x20] sm:$0xff]
    %v187 = vld [vmem:[#allocation2 + $0x28] sm:$0xff]
    %v188 = vld [vmem:[#allocation2 + $0x30] sm:$0xff]
    %v189 = vld [vmem:[#allocation2 + $0x38] sm:$0xff]
    %v190 = vld [vmem:[#allocation2 + $0x40] sm:$0xff]
    %v191 = vld [vmem:[#allocation2 + $0x48] sm:$0xff]
    %v192 = vld [vmem:[#allocation2 + $0x50] sm:$0xff]
    %v193 = vld [vmem:[#allocation2 + $0x58] sm:$0xff]
    %v194 = vld [vmem:[#allocation2 + $0x60] sm:$0xff]
    %v195 = vld [vmem:[#allocation2 + $0x68] sm:$0xff]
    %v196 = vld [vmem:[#allocation2 + $0x70] sm:$0xff]
    %v197 = vld [vmem:[#allocation2 + $0x78] sm:$0xff]
    %v198 = vld [vmem:[#allocation6] sm:$0xff]
    %v199 = vld [vmem:[#allocation6 + $0x8] sm:$0xff]
    %v200 = vld [vmem:[#allocation6 + $0x10] sm:$0xff]
    %v201 = vld [vmem:[#allocation6 + $0x18] sm:$0xff]
    %v202 = vld [vmem:[#allocation6 + $0x20] sm:$0xff]
    %v203 = vld [vmem:[#allocation6 + $0x28] sm:$0xff]
    %v204 = vld [vmem:[#allocation6 + $0x30] sm:$0xff]
    %v205 = vld [vmem:[#allocation6 + $0x38] sm:$0xff]
    %v206 = vld [vmem:[#allocation6 + $0x40] sm:$0xff]
    %v207 = vld [vmem:[#allocation6 + $0x48] sm:$0xff]
    %v208 = vld [vmem:[#allocation6 + $0x50] sm:$0xff]
    %v209 = vld [vmem:[#allocation6 + $0x58] sm:$0xff]
    %v210 = vld [vmem:[#allocation6 + $0x60] sm:$0xff]
    %v211 = vld [vmem:[#allocation6 + $0x68] sm:$0xff]
    %v212 = vld [vmem:[#allocation6 + $0x70] sm:$0xff]
    %v213 = vld [vmem:[#allocation6 + $0x78] sm:$0xff]
    %214 = vmatpush.msra.mxu0 %v180
    %215 = vmatpush.msra.mxu0 %v177
    %216 = vmatpush.msra.mxu0 %v174
    %217 = vmatpush.msra.mxu0 %v171
    %218 = vmatpush.msra.mxu0 %v168
    %219 = vmatpush.msra.mxu0 %v165
    %220 = vmatpush.msra.mxu0 %v162
    %221 = vmatpush.msra.mxu0 %v159
    %222 = vmatpush.msra.mxu0 %v156
    %223 = vmatpush.msra.mxu0 %v153
    %224 = vmatpush.msra.mxu0 %v150
    %225 = vmatpush.msra.mxu0 %v147
    %226 = vmatpush.msra.mxu0 %v144
    %227 = vmatpush.msra.mxu0 %v141
    %228 = vmatpush.msra.mxu0 %v138
    %229 = vmatpush.msra.mxu0 %v135
    %230 = vmatmul.f32.gmra.mxu0 %v198
    %v231 = vpop.f32.mrf.mxu0
    %v232 = vadd.f32 0.0, %v231
    %233 = vmatmul.f32.gmra.mxu0 %v199
    %v234 = vpop.f32.mrf.mxu0
    %v235 = vadd.f32 0.0, %v234
    %236 = vmatmul.f32.gmra.mxu0 %v200
    %v237 = vpop.f32.mrf.mxu0
    %v238 = vadd.f32 0.0, %v237
    %239 = vmatmul.f32.gmra.mxu0 %v201
    %v240 = vpop.f32.mrf.mxu0
    %v241 = vadd.f32 0.0, %v240
    %242 = vmatmul.f32.gmra.mxu0 %v202
    %v243 = vpop.f32.mrf.mxu0
    %v244 = vadd.f32 0.0, %v243
    %245 = vmatmul.f32.gmra.mxu0 %v203
    %v246 = vpop.f32.mrf.mxu0
    %v247 = vadd.f32 0.0, %v246
    %248 = vmatmul.f32.gmra.mxu0 %v204
    %v249 = vpop.f32.mrf.mxu0
    %v250 = vadd.f32 0.0, %v249
    %251 = vmatmul.f32.gmra.mxu0 %v205
    %v252 = vpop.f32.mrf.mxu0
    %v253 = vadd.f32 0.0, %v252
    %254 = vmatmul.f32.gmra.mxu0 %v206
    %v255 = vpop.f32.mrf.mxu0
    %v256 = vadd.f32 0.0, %v255
    %257 = vmatmul.f32.gmra.mxu0 %v207
    %v258 = vpop.f32.mrf.mxu0
    %v259 = vadd.f32 0.0, %v258
    %260 = vmatmul.f32.gmra.mxu0 %v208
    %v261 = vpop.f32.mrf.mxu0
    %v262 = vadd.f32 0.0, %v261
    %263 = vmatmul.f32.gmra.mxu0 %v209
    %v264 = vpop.f32.mrf.mxu0
    %v265 = vadd.f32 0.0, %v264
    %266 = vmatmul.f32.gmra.mxu0 %v210
    %v267 = vpop.f32.mrf.mxu0
    %v268 = vadd.f32 0.0, %v267
    %269 = vmatmul.f32.gmra.mxu0 %v211
    %v270 = vpop.f32.mrf.mxu0
    %v271 = vadd.f32 0.0, %v270
    %272 = vmatmul.f32.gmra.mxu0 %v212
    %v273 = vpop.f32.mrf.mxu0
    %v274 = vadd.f32 0.0, %v273
    %275 = vmatmul.f32.gmra.mxu0 %v213
    %v276 = vpop.f32.mrf.mxu0
    %v277 = vadd.f32 0.0, %v276
    %278 = vdwg.mxu0
    %v279 = vadd.f32 %v182, %v232
    %v280 = vadd.f32 %v183, %v235
    %v281 = vadd.f32 %v184, %v238
    %v282 = vadd.f32 %v185, %v241
    %v283 = vadd.f32 %v186, %v244
    %v284 = vadd.f32 %v187, %v247
    %v285 = vadd.f32 %v188, %v250
    %v286 = vadd.f32 %v189, %v253
    %v287 = vadd.f32 %v190, %v256
    %v288 = vadd.f32 %v191, %v259
    %v289 = vadd.f32 %v192, %v262
    %v290 = vadd.f32 %v193, %v265
    %v291 = vadd.f32 %v194, %v268
    %v292 = vadd.f32 %v195, %v271
    %v293 = vadd.f32 %v196, %v274
    %v294 = vadd.f32 %v197, %v277
    %295 = vst [vmem:[#allocation2] sm:$0xff] %v279
    %296 = vst [vmem:[#allocation2 + $0x8] sm:$0xff] %v280
    %297 = vst [vmem:[#allocation2 + $0x10] sm:$0xff] %v281
    %298 = vst [vmem:[#allocation2 + $0x18] sm:$0xff] %v282
    %299 = vst [vmem:[#allocation2 + $0x20] sm:$0xff] %v283
    %300 = vst [vmem:[#allocation2 + $0x28] sm:$0xff] %v284
    %301 = vst [vmem:[#allocation2 + $0x30] sm:$0xff] %v285
    %302 = vst [vmem:[#allocation2 + $0x38] sm:$0xff] %v286
    %303 = vst [vmem:[#allocation2 + $0x40] sm:$0xff] %v287
    %304 = vst [vmem:[#allocation2 + $0x48] sm:$0xff] %v288
    %305 = vst [vmem:[#allocation2 + $0x50] sm:$0xff] %v289
    %306 = vst [vmem:[#allocation2 + $0x58] sm:$0xff] %v290
    %307 = vst [vmem:[#allocation2 + $0x60] sm:$0xff] %v291
    %308 = vst [vmem:[#allocation2 + $0x68] sm:$0xff] %v292
    %309 = vst [vmem:[#allocation2 + $0x70] sm:$0xff] %v293
    %310 = vst [vmem:[#allocation2 + $0x78] sm:$0xff] %v294
    // Predicated region
    $region34: #{tpu_custom_call.1} parent=1 // pred_check
      %p311 = pneg %p65
    $region35: #{tpu_custom_call.1} parent=1 // pred_check_branch
      %313 = sbr.rel (%p311) target = $region37
    $region36: #{tpu_custom_call.1} parent=1 // pred_region
      %v314 = vld [vmem:[#allocation2] sm:$0xff]
      %v315 = vld [vmem:[#allocation2 + $0x8] sm:$0xff]
      %v316 = vld [vmem:[#allocation2 + $0x10] sm:$0xff]
      %v317 = vld [vmem:[#allocation2 + $0x18] sm:$0xff]
      %v318 = vld [vmem:[#allocation2 + $0x20] sm:$0xff]
      %v319 = vld [vmem:[#allocation2 + $0x28] sm:$0xff]
      %v320 = vld [vmem:[#allocation2 + $0x30] sm:$0xff]
      %v321 = vld [vmem:[#allocation2 + $0x38] sm:$0xff]
      %v322 = vld [vmem:[#allocation2 + $0x40] sm:$0xff]
      %v323 = vld [vmem:[#allocation2 + $0x48] sm:$0xff]
      %v324 = vld [vmem:[#allocation2 + $0x50] sm:$0xff]
      %v325 = vld [vmem:[#allocation2 + $0x58] sm:$0xff]
      %v326 = vld [vmem:[#allocation2 + $0x60] sm:$0xff]
      %v327 = vld [vmem:[#allocation2 + $0x68] sm:$0xff]
      %v328 = vld [vmem:[#allocation2 + $0x70] sm:$0xff]
      %v329 = vld [vmem:[#allocation2 + $0x78] sm:$0xff]
      %v330 = vld [vmem:[%s3] sm:$0x1]
      %v332 = vperm.slane %v330, 0
      %v334 = vadd.f32 %v314, %v332
      %v335 = vadd.f32 %v315, %v332
      %v336 = vadd.f32 %v316, %v332
      %v337 = vadd.f32 %v317, %v332
      %v338 = vadd.f32 %v318, %v332
      %v339 = vadd.f32 %v319, %v332
      %v340 = vadd.f32 %v320, %v332
      %v341 = vadd.f32 %v321, %v332
      %v342 = vadd.f32 %v322, %v332
      %v343 = vadd.f32 %v323, %v332
      %v344 = vadd.f32 %v324, %v332
      %v345 = vadd.f32 %v325, %v332
      %v346 = vadd.f32 %v326, %v332
      %v347 = vadd.f32 %v327, %v332
      %v348 = vadd.f32 %v328, %v332
      %v349 = vadd.f32 %v329, %v332
      %350 = vst [vmem:[#allocation9] sm:$0xff] %v334
      %351 = vst [vmem:[#allocation9 + $0x8] sm:$0xff] %v335
      %352 = vst [vmem:[#allocation9 + $0x10] sm:$0xff] %v336
      %353 = vst [vmem:[#allocation9 + $0x18] sm:$0xff] %v337
      %354 = vst [vmem:[#allocation9 + $0x20] sm:$0xff] %v338
      %355 = vst [vmem:[#allocation9 + $0x28] sm:$0xff] %v339
      %356 = vst [vmem:[#allocation9 + $0x30] sm:$0xff] %v340
      %357 = vst [vmem:[#allocation9 + $0x38] sm:$0xff] %v341
      %358 = vst [vmem:[#allocation9 + $0x40] sm:$0xff] %v342
      %359 = vst [vmem:[#allocation9 + $0x48] sm:$0xff] %v343
      %360 = vst [vmem:[#allocation9 + $0x50] sm:$0xff] %v344
      %361 = vst [vmem:[#allocation9 + $0x58] sm:$0xff] %v345
      %362 = vst [vmem:[#allocation9 + $0x60] sm:$0xff] %v346
      %363 = vst [vmem:[#allocation9 + $0x68] sm:$0xff] %v347
      %364 = vst [vmem:[#allocation9 + $0x70] sm:$0xff] %v348
      %365 = vst [vmem:[#allocation9 + $0x78] sm:$0xff] %v349
    $region37: #{tpu_custom_call.1} parent=1 // pred_fallthru
      _
    // Predicated region
    $region38: #{tpu_custom_call.1} parent=1 // pred_check
      _
    $region39: #{tpu_custom_call.1} parent=1 // pred_check_branch
      %367 = sbr.rel (0) target = $region41
    $region40: #{tpu_custom_call.1} parent=1 // pred_region
      %369 = vsyncadd [#allocation5], 0
      %s370 = sshll.u32 [#allocation9], 4
      %s371 = int_to_ptr.vmem [resolvable:$true] %s370
      %s372 = sshll.u32 %s4, 4
      %s373 = int_to_ptr.hbm [resolvable:$true] %s372
      %378 = dma.vmem_to_hbm [thread:$0]  %s371, 2048, %s373, [#allocation5], 128, 128, 8
    $region41: #{tpu_custom_call.1} parent=1 // pred_fallthru
      _
    // Predicated region
    $region42: #{tpu_custom_call.1} parent=1 // pred_check
      _
    $region43: #{tpu_custom_call.1} parent=1 // pred_check_branch
      %380 = sbr.rel (0) target = $region45
    $region44: #{tpu_custom_call.1} parent=1 // pred_region
      %382 = dma.done [#allocation5], 2048
    $region45: #{tpu_custom_call.1} parent=1 // pred_fallthru
      _
    %383 = vsyncpa [#allocation4], 1
    %384 = vsyncpa [#allocation7], 1
    %385 = vsyncpa [#allocation5], 1

</llo_original>
